<compile_context>
chip_gen: v7x
topology: tpu7x:2x2x1
jax: 0.10.0
libtpu: 0.0.40
codegen_flags: <defaults>
</compile_context>

<pallas_src>
import functools
import math

import jax
import jax.numpy as jnp
from jax.experimental import pallas as pl
from jax.experimental.pallas import tpu as pltpu


def _leaky_relu(x, slope=0.01):
    return jnp.where(x > 0, x, slope * x)


def _round_up(x, m):
    return (x + m - 1) // m * m


def aggregator_kernel(col_ids_ref, nnz_ref, att_ref, emb_src_ref, e_row_ref,
                      w_blk_ref, b_cat_ref, out_ref, acc_ref, *, d_out_pad):
    """Grid = (destination-row tiles, nonzero-column-block slots).

    col_ids_ref : (GM, GK) i32 SMEM  per-row-tile nonzero col-block ids (padded)
    nnz_ref     : (GM,)    i32 SMEM  number of nonzero col blocks per row tile
    att_ref     : (TM, TK)        bf16  attention block A[dst_tile, col_block]
    emb_src_ref : (TK, D_in)      bf16  source-node embeddings of that col block
    e_row_ref   : (TM, D_in)      f32   own embeddings of this destination tile
    w_blk_ref   : (2*D_in, 2*Dop) bf16  block-diag [[W1^T,0],[0,W2^T]] (lane-padded)
    b_cat_ref   : (1, 2*Dop)      f32   [b1 | b2] (lane-padded)
    out_ref     : (TM, Dop)       f32
    acc_ref     : (TM, D_in)      f32   scratch accumulator for N_h
    """
    i = pl.program_id(0)
    k = pl.program_id(1)

    @pl.when(k == 0)
    def _init():
        acc_ref[...] = jnp.zeros_like(acc_ref)

    # Message passing: only blocks that actually contain edges are accumulated.
    # For k >= nnz[i] the index_map repeats the previous block, so there is no
    # extra DMA and this branch is skipped.
    @pl.when(k < nnz_ref[i])
    def _accumulate():
        acc_ref[...] += jnp.dot(att_ref[...], emb_src_ref[...],
                                preferred_element_type=jnp.float32)

    @pl.when(k == pl.num_programs(1) - 1)
    def _finalize():
        n_h = acc_ref[...]                               # (TM, D_in) f32
        e_tile = e_row_ref[...]                          # (TM, D_in) f32
        sum_emb = (e_tile + n_h).astype(jnp.bfloat16)    # bf16 MXU operands
        bi_emb = (e_tile * n_h).astype(jnp.bfloat16)
        x = jnp.concatenate([sum_emb, bi_emb], axis=-1)  # (TM, 2*D_in)
        y = jnp.dot(x, w_blk_ref[...], preferred_element_type=jnp.float32)
        y = _leaky_relu(y + b_cat_ref[...])              # (TM, 2*Dop)
        # TODO(synk): message_dropout is identity in eval mode; training-mode
        # dropout would use pltpu.prng_seed + pltpu.stateful_bernoulli here.
        out_ref[...] = (y[:, :d_out_pad] + y[:, d_out_pad:]).astype(out_ref.dtype)


def aggregator_forward(att, entity_embed, w1, b1, w2, b2, *,
                       tile_m=None, tile_k=None):
    """Bi-interaction KGAT aggregator forward (eval mode).

    att          : (N, N) dense attention adjacency, att[dst, src] (0 = no edge)
    entity_embed : (N, D_in)
    w1, w2       : (D_out, D_in)   (PyTorch nn.Linear weight layout)
    b1, b2       : (D_out,)
    returns      : (N, D_out)
    """
    n, d_in = entity_embed.shape
    d_out = w1.shape[0]
    d_out_pad = _round_up(d_out, 128)          # lane-dense output stores

    # Pad the node axis to a multiple of 128; zero padding is a no-op for the
    # math (zero att rows/cols), padded output rows are sliced off.
    n_pad = _round_up(n, 128)
    if tile_m is None:
        tile_m = 128
        for cand in (512, 256):
            # Keep >= 2 row tiles so v7x's two TensorCores both get work.
            if n_pad % cand == 0 and n_pad // cand >= 2:
                tile_m = cand
                break
    if tile_k is None:
        tile_k = 128
        for cand in (2048, 1024, 512, 256):
            if n_pad % cand == 0:
                tile_k = cand
                break
    assert n_pad % tile_m == 0 and n_pad % tile_k == 0
    gm = n_pad // tile_m
    gk = n_pad // tile_k
    pad_r = n_pad - n

    # Cast A to bf16 *before* padding (halves the pad round trip through HBM).
    att_bf = jnp.asarray(att).astype(jnp.bfloat16)
    emb_f32 = jnp.asarray(entity_embed, jnp.float32)
    if pad_r:
        att_bf = jnp.pad(att_bf, ((0, pad_r), (0, pad_r)))
        emb_f32 = jnp.pad(emb_f32, ((0, pad_r), (0, 0)))
    emb_bf = emb_f32.astype(jnp.bfloat16)

    # Block-sparsity metadata (scalar-prefetched to SMEM): for each destination
    # row tile, the ascending list of column blocks containing >= 1 edge, padded
    # by repeating the last nonzero block (so the pipeline dedups its DMA).
    blk = att_bf.reshape(gm, tile_m, gk, tile_k)
    block_mask = jnp.any(blk != 0, axis=(1, 3))                       # (gm, gk)
    nnz = block_mask.sum(axis=1).astype(jnp.int32)                    # (gm,)
    cols = jnp.arange(gk, dtype=jnp.int32)
    keys = jnp.where(block_mask, cols[None, :], gk + cols[None, :])
    order = jnp.argsort(keys, axis=1).astype(jnp.int32)               # nnz first
    last_valid = jnp.take_along_axis(order, jnp.maximum(nnz - 1, 0)[:, None],
                                     axis=1)
    k_pos = jnp.arange(gk, dtype=jnp.int32)[None, :]
    col_ids = jnp.where(k_pos < nnz[:, None], order, last_valid)      # (gm, gk)

    # Lane-padded, block-diagonal weight so the two finalize matmuls fuse into
    # one MXU call: [ sum | bi ] @ [[W1^T, 0], [0, W2^T]].
    w1t = jnp.zeros((d_in, d_out_pad), jnp.float32).at[:, :d_out].set(
        jnp.asarray(w1, jnp.float32).T)
    w2t = jnp.zeros((d_in, d_out_pad), jnp.float32).at[:, :d_out].set(
        jnp.asarray(w2, jnp.float32).T)
    w_blk = jnp.zeros((2 * d_in, 2 * d_out_pad), jnp.float32)
    w_blk = w_blk.at[:d_in, :d_out_pad].set(w1t)
    w_blk = w_blk.at[d_in:, d_out_pad:].set(w2t)
    w_blk = w_blk.astype(jnp.bfloat16)
    b_cat = jnp.zeros((1, 2 * d_out_pad), jnp.float32)
    b_cat = b_cat.at[0, :d_out].set(jnp.asarray(b1, jnp.float32))
    b_cat = b_cat.at[0, d_out_pad:d_out_pad + d_out].set(
        jnp.asarray(b2, jnp.float32))

    grid = (gm, gk)

    # Advisory estimate (dense upper bound -- the block-sparse path may do less).
    cost = pl.CostEstimate(
        flops=int(2 * n_pad * n_pad * d_in
                  + 2 * n_pad * (2 * d_in) * (2 * d_out_pad)),
        transcendentals=0,
        bytes_accessed=int(n_pad * n_pad * 2            # A (bf16)
                           + gm * n_pad * d_in * 2      # re-streamed src E (bf16)
                           + n_pad * d_in * 4           # own E (f32)
                           + w_blk.size * 2 + b_cat.size * 4
                           + n_pad * d_out_pad * 4),    # output
    )

    # Double-buffered working set -> explicit VMEM limit (v7x has only 64 MiB).
    vmem_bytes = (2 * tile_m * tile_k * 2          # A blocks (bf16, 2 buffers)
                  + 2 * tile_k * d_in * 2          # src E blocks
                  + 2 * tile_m * d_in * 4          # own E tile (f32)
                  + 2 * w_blk.size * 2 + 2 * b_cat.size * 4
                  + 2 * tile_m * d_out_pad * 4     # output tile
                  + tile_m * d_in * 4)             # acc scratch
    vmem_limit = min(56 * 1024 * 1024,
                     max(32 * 1024 * 1024, int(vmem_bytes * 2)))

    kernel = functools.partial(aggregator_kernel, d_out_pad=d_out_pad)

    out_pad = pl.pallas_call(
        kernel,
        out_shape=jax.ShapeDtypeStruct((n_pad, d_out_pad), jnp.float32),
        grid_spec=pltpu.PrefetchScalarGridSpec(
            num_scalar_prefetch=2,
            grid=grid,
            in_specs=[
                pl.BlockSpec((tile_m, tile_k),
                             lambda i, k, cid, cnt: (i, cid[i, k])),    # A block
                pl.BlockSpec((tile_k, d_in),
                             lambda i, k, cid, cnt: (cid[i, k], 0)),    # src E
                pl.BlockSpec((tile_m, d_in),
                             lambda i, k, cid, cnt: (i, 0)),            # own E
                pl.BlockSpec((2 * d_in, 2 * d_out_pad),
                             lambda i, k, cid, cnt: (0, 0)),            # W blkdiag
                pl.BlockSpec((1, 2 * d_out_pad),
                             lambda i, k, cid, cnt: (0, 0)),            # biases
            ],
            out_specs=pl.BlockSpec((tile_m, d_out_pad),
                                   lambda i, k, cid, cnt: (i, 0)),
            scratch_shapes=[pltpu.VMEM((tile_m, d_in), jnp.float32)],
        ),
        compiler_params=pltpu.CompilerParams(
            dimension_semantics=("parallel", "arbitrary"),
            vmem_limit_bytes=vmem_limit,
        ),
        cost_estimate=cost,
    )(col_ids, nnz, att_bf, emb_bf, emb_f32, w_blk, b_cat)

    return out_pad[:n, :d_out].astype(entity_embed.dtype)


def _reference(att, entity_embed, w1, b1, w2, b2):
    """Pure-JAX reference with matching bf16-operand / f32-accumulate matmuls.

    Note: the real PyTorch baseline is pure f32; the bf16 MXU operands are an
    intentional precision tradeoff, hence the ~2e-2 tolerance in the test.
    """
    f32 = jnp.float32
    att_bf = att.astype(jnp.bfloat16).astype(f32)
    emb_bf = entity_embed.astype(jnp.bfloat16).astype(f32)
    n_h = att_bf @ emb_bf
    e = entity_embed.astype(f32)
    s = (e + n_h).astype(jnp.bfloat16).astype(f32)
    b = (e * n_h).astype(jnp.bfloat16).astype(f32)
    w1_bf = w1.astype(jnp.bfloat16).astype(f32)
    w2_bf = w2.astype(jnp.bfloat16).astype(f32)
    o1 = jax.nn.leaky_relu(s @ w1_bf.T + b1, negative_slope=0.01)
    o2 = jax.nn.leaky_relu(b @ w2_bf.T + b2, negative_slope=0.01)
    return o1 + o2


if __name__ == "__main__":
    def _run_case(n, d_in, d_out, block_structured=False):
        key = jax.random.PRNGKey(0)
        k_emb, k_att, k_mask, k_w1, k_b1, k_w2, k_b2 = jax.random.split(key, 7)

        entity_embed = jax.random.normal(k_emb, (n, d_in), dtype=jnp.float32)

        # Sparse-ish random attention adjacency (att[dst, src]); 0 where no edge.
        att_vals = jax.random.uniform(k_att, (n, n), dtype=jnp.float32)
        edge_mask = (jax.random.uniform(k_mask, (n, n)) < 0.1).astype(jnp.float32)
        att = att_vals * edge_mask
        if block_structured:
            # Checkerboard 128x128 block sparsity: exercises the block-sparse
            # scalar-prefetch path (skipped DMAs + guarded accumulate).
            bi = jnp.arange(n) // 128
            blkmask = ((bi[:, None] + bi[None, :]) % 2 == 0).astype(jnp.float32)
            att = att * blkmask

        # Parameter init matching nn.Linear + xavier_normal_ on the weights.
        xavier_std = math.sqrt(2.0 / (d_in + d_out))
        w1 = xavier_std * jax.random.normal(k_w1, (d_out, d_in), dtype=jnp.float32)
        w2 = xavier_std * jax.random.normal(k_w2, (d_out, d_in), dtype=jnp.float32)
        bound = 1.0 / math.sqrt(d_in)
        b1 = jax.random.uniform(k_b1, (d_out,), minval=-bound, maxval=bound,
                                dtype=jnp.float32)
        b2 = jax.random.uniform(k_b2, (d_out,), minval=-bound, maxval=bound,
                                dtype=jnp.float32)

        out = jax.block_until_ready(
            aggregator_forward(att, entity_embed, w1, b1, w2, b2))
        ref = _reference(att, entity_embed, w1, b1, w2, b2)
        assert out.shape == (n, d_out)
        max_err = float(jnp.max(jnp.abs(out - ref)))
        assert jnp.allclose(out, ref, atol=2e-2, rtol=2e-2), max_err

    # Tile-aligned case, a ragged case (zero-padding path), and a block-structured
    # sparse case (exercises the scalar-prefetched block-skip path).
    _run_case(128, 64, 32)
    _run_case(96, 64, 32)
    _run_case(384, 64, 32, block_structured=True)
    print("KERNEL_OK")
</pallas_src>

<mosaic_0001>
module attributes {stable_mosaic.version = 11 : i64} {
  func.func @aggregator_kernel(%arg0: i32, %arg1: i32, %arg2: memref<1x1xi32, #tpu.memory_space<smem>>, %arg3: memref<1xi32, #tpu.memory_space<smem>>, %arg4: memref<128x128xbf16, #tpu.memory_space<vmem>>, %arg5: memref<128x64xbf16, #tpu.memory_space<vmem>>, %arg6: memref<128x64xf32, #tpu.memory_space<vmem>>, %arg7: memref<128x256xbf16, #tpu.memory_space<vmem>>, %arg8: memref<1x256xf32, #tpu.memory_space<vmem>>, %arg9: memref<128x128xf32, #tpu.memory_space<vmem>>, %arg10: memref<128x64xf32, #tpu.memory_space<vmem>>) attributes {dimension_semantics = [#tpu.dimension_semantics<parallel>, #tpu.dimension_semantics<arbitrary>], iteration_bounds = array<i64: 1, 1>, scalar_prefetch = 2 : i64, scratch_operands = 1 : i64, tpu.core_type = #tpu.core_type<tc>, window_params = [{transform_indices = @transform_0, window_bounds = array<i64: 128, 128>}, {transform_indices = @transform_1, window_bounds = array<i64: 128, 64>}, {transform_indices = @transform_2, window_bounds = array<i64: 128, 64>}, {pipeline_mode = #tpu.pipeline_mode<synchronous>, transform_indices = @transform_3, window_bounds = array<i64: 128, 256>}, {pipeline_mode = #tpu.pipeline_mode<synchronous>, transform_indices = @transform_4, window_bounds = array<i64: 1, 256>}, {transform_indices = @transform_5, window_bounds = array<i64: 128, 128>}]} {
    %c0_i32 = arith.constant 0 : i32
    %0 = arith.cmpi eq, %arg1, %c0_i32 : i32
    %1 = arith.extui %0 : i1 to i32
    %c0_i32_0 = arith.constant 0 : i32
    %2 = arith.cmpi ne, %1, %c0_i32_0 : i32
    scf.if %2 {
      %cst = arith.constant 0.000000e+00 : f32
      %11 = vector.broadcast %cst : f32 to vector<128x64xf32>
      %c0 = arith.constant 0 : index
      %c0_4 = arith.constant 0 : index
      %12 = vector.load %arg10[%c0, %c0_4] : memref<128x64xf32, #tpu.memory_space<vmem>>, vector<128x64xf32>
      tpu.vector_store %arg10[%c0, %c0_4], %11 {strides = array<i32>} : memref<128x64xf32, #tpu.memory_space<vmem>>, vector<128x64xf32>,
    } else {
    }
    %3 = arith.index_cast %arg0 : i32 to index
    %4 = memref.load %arg3[%3] : memref<1xi32, #tpu.memory_space<smem>>
    %5 = arith.cmpi slt, %arg1, %4 : i32
    %6 = arith.extui %5 : i1 to i32
    %c0_i32_1 = arith.constant 0 : i32
    %7 = arith.cmpi ne, %6, %c0_i32_1 : i32
    scf.if %7 {
      %c0 = arith.constant 0 : index
      %c0_4 = arith.constant 0 : index
      %11 = vector.load %arg10[%c0, %c0_4] : memref<128x64xf32, #tpu.memory_space<vmem>>, vector<128x64xf32>
      %c0_5 = arith.constant 0 : index
      %c0_6 = arith.constant 0 : index
      %12 = vector.load %arg4[%c0_5, %c0_6] : memref<128x128xbf16, #tpu.memory_space<vmem>>, vector<128x128xbf16>
      %c0_7 = arith.constant 0 : index
      %c0_8 = arith.constant 0 : index
      %13 = vector.load %arg5[%c0_7, %c0_8] : memref<128x64xbf16, #tpu.memory_space<vmem>>, vector<128x64xbf16>
      %cst = arith.constant dense<0.000000e+00> : vector<128x64xf32>
      %14 = tpu.matmul %12, %13, %cst {dimension_numbers = #tpu.dot_dimension_numbers<[1], [0], [0], [1], [0, 0, 1, 1], [], []>} : vector<128x128xbf16>, vector<128x64xbf16>, vector<128x64xf32> -> vector<128x64xf32>
      %15 = arith.addf %11, %14 : vector<128x64xf32>
      %c0_9 = arith.constant 0 : index
      %c0_10 = arith.constant 0 : index
      %16 = vector.load %arg10[%c0_9, %c0_10] : memref<128x64xf32, #tpu.memory_space<vmem>>, vector<128x64xf32>
      tpu.vector_store %arg10[%c0_9, %c0_10], %15 {strides = array<i32>} : memref<128x64xf32, #tpu.memory_space<vmem>>, vector<128x64xf32>,
    } else {
    }
    %c0_i32_2 = arith.constant 0 : i32
    %8 = arith.cmpi eq, %arg1, %c0_i32_2 : i32
    %9 = arith.extui %8 : i1 to i32
    %c0_i32_3 = arith.constant 0 : i32
    %10 = arith.cmpi ne, %9, %c0_i32_3 : i32
    scf.if %10 {
      %c0 = arith.constant 0 : index
      %c0_4 = arith.constant 0 : index
      %11 = vector.load %arg10[%c0, %c0_4] : memref<128x64xf32, #tpu.memory_space<vmem>>, vector<128x64xf32>
      %c0_5 = arith.constant 0 : index
      %c0_6 = arith.constant 0 : index
      %12 = vector.load %arg6[%c0_5, %c0_6] : memref<128x64xf32, #tpu.memory_space<vmem>>, vector<128x64xf32>
      %13 = arith.addf %12, %11 : vector<128x64xf32>
      %14 = arith.truncf %13 : vector<128x64xf32> to vector<128x64xbf16>
      %15 = arith.mulf %12, %11 : vector<128x64xf32>
      %16 = arith.truncf %15 : vector<128x64xf32> to vector<128x64xbf16>
      %17 = tpu.concatenate %14, %16 in 1 : vector<128x64xbf16>, vector<128x64xbf16> -> vector<128x128xbf16>
      %c0_7 = arith.constant 0 : index
      %c0_8 = arith.constant 0 : index
      %18 = vector.load %arg7[%c0_7, %c0_8] : memref<128x256xbf16, #tpu.memory_space<vmem>>, vector<128x256xbf16>
      %cst = arith.constant dense<0.000000e+00> : vector<128x256xf32>
      %19 = tpu.matmul %17, %18, %cst {dimension_numbers = #tpu.dot_dimension_numbers<[1], [0], [0], [1], [0, 0, 1, 1], [], []>} : vector<128x128xbf16>, vector<128x256xbf16>, vector<128x256xf32> -> vector<128x256xf32>
      %c0_9 = arith.constant 0 : index
      %c0_10 = arith.constant 0 : index
      %20 = vector.load %arg8[%c0_9, %c0_10] : memref<1x256xf32, #tpu.memory_space<vmem>>, vector<1x256xf32>
      %21 = vector.broadcast %20 : vector<1x256xf32> to vector<128x256xf32>
      %22 = arith.addf %19, %21 : vector<128x256xf32>
      %cst_11 = arith.constant 0.000000e+00 : f32
      %23 = vector.broadcast %cst_11 : f32 to vector<128x256xf32>
      %24 = arith.cmpf ogt, %22, %23 : vector<128x256xf32>
      %cst_12 = arith.constant 0.00999999977 : f32
      %25 = vector.broadcast %cst_12 : f32 to vector<128x256xf32>
      %26 = arith.mulf %25, %22 : vector<128x256xf32>
      %27 = arith.select %24, %22, %26 : vector<128x256xi1>, vector<128x256xf32>
      %28 = vector.extract_strided_slice %27 {offsets = [0, 0], sizes = [128, 128], strides = [1, 1]} : vector<128x256xf32> to vector<128x128xf32>
      %29 = vector.extract_strided_slice %27 {offsets = [0, 128], sizes = [128, 128], strides = [1, 1]} : vector<128x256xf32> to vector<128x128xf32>
      %30 = arith.addf %28, %29 : vector<128x128xf32>
      %c0_13 = arith.constant 0 : index
      %c0_14 = arith.constant 0 : index
      %31 = vector.load %arg9[%c0_13, %c0_14] : memref<128x128xf32, #tpu.memory_space<vmem>>, vector<128x128xf32>
      tpu.vector_store %arg9[%c0_13, %c0_14], %30 {strides = array<i32>} : memref<128x128xf32, #tpu.memory_space<vmem>>, vector<128x128xf32>,
    } else {
    }
    return
  }
  func.func @transform_0(%arg0: i32, %arg1: i32, %arg2: memref<1x1xi32, #tpu.memory_space<smem>>, %arg3: memref<1xi32, #tpu.memory_space<smem>>) -> (i32, i32) {
    %0 = arith.index_cast %arg0 : i32 to index
    %1 = arith.index_cast %arg1 : i32 to index
    %2 = memref.load %arg2[%0, %1] : memref<1x1xi32, #tpu.memory_space<smem>>
    %c0_i32 = arith.constant 0 : i32
    return %arg0, %2 : i32, i32
  }
  func.func @transform_1(%arg0: i32, %arg1: i32, %arg2: memref<1x1xi32, #tpu.memory_space<smem>>, %arg3: memref<1xi32, #tpu.memory_space<smem>>) -> (i32, i32) {
    %0 = arith.index_cast %arg0 : i32 to index
    %1 = arith.index_cast %arg1 : i32 to index
    %2 = memref.load %arg2[%0, %1] : memref<1x1xi32, #tpu.memory_space<smem>>
    %c0_i32 = arith.constant 0 : i32
    %c0_i32_0 = arith.constant 0 : i32
    return %2, %c0_i32 : i32, i32
  }
  func.func @transform_2(%arg0: i32, %arg1: i32, %arg2: memref<1x1xi32, #tpu.memory_space<smem>>, %arg3: memref<1xi32, #tpu.memory_space<smem>>) -> (i32, i32) {
    %c0_i32 = arith.constant 0 : i32
    %c0_i32_0 = arith.constant 0 : i32
    return %arg0, %c0_i32 : i32, i32
  }
  func.func @transform_3(%arg0: i32, %arg1: i32, %arg2: memref<1x1xi32, #tpu.memory_space<smem>>, %arg3: memref<1xi32, #tpu.memory_space<smem>>) -> (i32, i32) {
    %c0_i32 = arith.constant 0 : i32
    %c0_i32_0 = arith.constant 0 : i32
    %c0_i32_1 = arith.constant 0 : i32
    return %c0_i32, %c0_i32_0 : i32, i32
  }
  func.func @transform_4(%arg0: i32, %arg1: i32, %arg2: memref<1x1xi32, #tpu.memory_space<smem>>, %arg3: memref<1xi32, #tpu.memory_space<smem>>) -> (i32, i32) {
    %c0_i32 = arith.constant 0 : i32
    %c0_i32_0 = arith.constant 0 : i32
    %c0_i32_1 = arith.constant 0 : i32
    return %c0_i32, %c0_i32_0 : i32, i32
  }
  func.func @transform_5(%arg0: i32, %arg1: i32, %arg2: memref<1x1xi32, #tpu.memory_space<smem>>, %arg3: memref<1xi32, #tpu.memory_space<smem>>) -> (i32, i32) {
    %c0_i32 = arith.constant 0 : i32
    %c0_i32_0 = arith.constant 0 : i32
    return %arg0, %c0_i32 : i32, i32
  }
}

</mosaic_0001>

<llo_original>
// kernel: tpu_custom_call.1
$region0: #{tpu_custom_call.1}
  #allocation0 [shape = 'u32[]', space=smem, size = 0x4, offset = 0x4, fixed_abs, tag = 'smem constant byte address 0x4 - core index']
  #allocation1 [shape = 'u32[144,128]{1,0:T(1,128)}', space=vmem, size = 0x12000, scoped, tag = 'internal scratch']
  #allocation2 [shape = 'f32[128,64]{1,0:T(8,128)}', space=vmem, size = 0x10000, scoped, tag = 'scratch operand']
  #allocation3 [shape = 's32[1]{0}', space=sflag, size = 0x4, scoped, tag = 'scoped memory for tpu_custom_call.1']
  #allocation4 [shape = 's32[1,1]{1,0:T(1,128)S(6)}', space=smem, size = 0x200, scoped, tag = 'prefetched SMEM operand 0']
  #allocation5 [shape = 's32[1]{0:T(128)S(6)}', space=smem, size = 0x200, scoped, tag = 'prefetched SMEM operand 1']
  %s0 = inlined_call_operand.<no memory space> [shape: s32[1,1], index: 0, kind: input, shape index: {}]
  %s1 = inlined_call_operand.<no memory space> [shape: s32[1], index: 1, kind: input, shape index: {}]
  %s2 = inlined_call_operand.vmem [shape: bf16[128,128], index: 2, kind: input, shape index: {}]
  %s3 = inlined_call_operand.vmem [shape: bf16[128,64], index: 3, kind: input, shape index: {}]
  %s4 = inlined_call_operand.vmem [shape: f32[128,64], index: 4, kind: input, shape index: {}]
  %s5 = inlined_call_operand.vmem [shape: bf16[128,256], index: 5, kind: input, shape index: {}]
  %s6 = inlined_call_operand.vmem [shape: f32[1,256], index: 6, kind: input, shape index: {}]
  %s7 = inlined_call_operand.hbm [shape: f32[128,128], index: 7, kind: output, shape index: {}]
  %s8 = sld [smem:[#allocation0]]
  $region42: #{tpu_custom_call.1} parent=0
    _
  %s10 = ssub.s32 1, %s8
  %s11 = scalar_select 0, %s10, %s8
  %12 = sst [smem:[#allocation4]] %s0
  %13 = sst [smem:[#allocation5]] %s1
  $region1: #{tpu_custom_call.1} parent=0
    #allocation6 [shape = 'u8[65536]{0}', space=vmem, size = 0x10000, scoped, tag = 'output window, operand 0, single buffered']
    #allocation7 [shape = 's32[1]{0}', space=sflag, size = 0x4, scoped, tag = 'scoped memory for tpu_custom_call.1']
    %14 = vsyncpa [#allocation7], 0
    // Predicated region
    $region2: #{tpu_custom_call.1} parent=1 // pred_check
      _
    $region3: #{tpu_custom_call.1} parent=1 // pred_check_branch
      %16 = sbr.rel (0) target = $region5
    $region4: #{tpu_custom_call.1} parent=1 // pred_region
      %s17 = sadd.s32 0, 0
      %s18 = smul.u32 %s17, 128
      %s19 = sadd.s32 %s18, 0
      %s20 = sld [smem:[#allocation4 + %s19]]
      %p21 = scmp.lt.s32.totalorder %s20, 0
      %s22 = scalar_select %p21, %s20, 0
      %s23 = smul.addr %s22, 4
      %s24 = scalar_lea.vmem %s2, %s23
      %s25 = sadd.s32 0, 0
      %s26 = smul.u32 %s25, 128
      %s27 = sadd.s32 %s26, 0
      %s28 = sld [smem:[#allocation4 + %s27]]
    $region5: #{tpu_custom_call.1} parent=1 // pred_fallthru
      _
    // Predicated region
    $region6: #{tpu_custom_call.1} parent=1 // pred_check
      _
    $region7: #{tpu_custom_call.1} parent=1 // pred_check_branch
      %30 = sbr.rel (0) target = $region9
    $region8: #{tpu_custom_call.1} parent=1 // pred_region
      %s31 = sadd.s32 0, 0
      %s32 = smul.u32 %s31, 128
      %s33 = sadd.s32 %s32, 0
      %s34 = sld [smem:[#allocation4 + %s33]]
      %s35 = smul.u32 16, %s34
      %p36 = scmp.lt.s32.totalorder %s35, 15
      %s37 = scalar_select %p36, %s35, 15
      %s38 = smul.addr %s37, 4
      %s39 = scalar_lea.vmem %s3, %s38
      %s40 = sadd.s32 0, 0
      %s41 = smul.u32 %s40, 128
      %s42 = sadd.s32 %s41, 0
      %s43 = sld [smem:[#allocation4 + %s42]]
      %s44 = smul.u32 16, %s43
    $region9: #{tpu_custom_call.1} parent=1 // pred_fallthru
      _
    // Predicated region
    $region10: #{tpu_custom_call.1} parent=1 // pred_check
      _
    $region11: #{tpu_custom_call.1} parent=1 // pred_check_branch
      %46 = sbr.rel (0) target = $region13
    $region12: #{tpu_custom_call.1} parent=1 // pred_region
      _
    $region13: #{tpu_custom_call.1} parent=1 // pred_fallthru
      _
    // Predicated region
    $region14: #{tpu_custom_call.1} parent=1 // pred_check
      _
    $region15: #{tpu_custom_call.1} parent=1 // pred_check_branch
      %48 = sbr.rel (0) target = $region17
    $region16: #{tpu_custom_call.1} parent=1 // pred_region
      _
    $region17: #{tpu_custom_call.1} parent=1 // pred_fallthru
      _
    // Predicated region
    $region18: #{tpu_custom_call.1} parent=1 // pred_check
      _
    $region19: #{tpu_custom_call.1} parent=1 // pred_check_branch
      %50 = sbr.rel (0) target = $region21
    $region20: #{tpu_custom_call.1} parent=1 // pred_region
      _
    $region21: #{tpu_custom_call.1} parent=1 // pred_fallthru
      _
    %s51 = sadd.s32 0, 0
    %s52 = smul.u32 %s51, 128
    %s53 = sadd.s32 %s52, 0
    %s54 = sld [smem:[#allocation4 + %s53]]
    %p55 = scmp.lt.s32.totalorder %s54, 0
    %s56 = scalar_select %p55, %s54, 0
    %s57 = smul.addr %s56, 4
    %s58 = scalar_lea.vmem %s2, %s57
    %s59 = sadd.s32 0, 0
    %s60 = smul.u32 %s59, 128
    %s61 = sadd.s32 %s60, 0
    %s62 = sld [smem:[#allocation4 + %s61]]
    %s63 = smul.u32 16, %s62
    %p64 = scmp.lt.s32.totalorder %s63, 15
    %s65 = scalar_select %p64, %s63, 15
    %s66 = smul.addr %s65, 4
    %s67 = scalar_lea.vmem %s3, %s66
    %s68 = sadd.s32 0, 0
    %s69 = smul.u32 %s68, 128
    %s70 = sadd.s32 %s69, 0
    %s71 = sld [smem:[#allocation4 + %s70]]
    %p72 = scmp.lt.s32.totalorder %s71, 0
    %s73 = scalar_select %p72, %s71, 0
    %s74 = smul.addr %s73, 4
    %s75 = scalar_lea.vmem %s2, %s74
    %s76 = sadd.s32 0, 0
    %s77 = smul.u32 %s76, 128
    %s78 = sadd.s32 %s77, 0
    %s79 = sld [smem:[#allocation4 + %s78]]
    %s80 = sadd.s32 0, 0
    %s81 = smul.u32 %s80, 128
    %s82 = sadd.s32 %s81, 0
    %s83 = sld [smem:[#allocation4 + %s82]]
    %s84 = smul.u32 16, %s83
    %p85 = scmp.lt.s32.totalorder %s84, 15
    %s86 = scalar_select %p85, %s84, 15
    %s87 = smul.addr %s86, 4
    %s88 = scalar_lea.vmem %s3, %s87
    %s89 = sadd.s32 0, 0
    %s90 = smul.u32 %s89, 128
    %s91 = sadd.s32 %s90, 0
    %s92 = sld [smem:[#allocation4 + %s91]]
    %s93 = smul.u32 16, %s92
    %p95 = scmp.eq.s32.totalorder 0, 0
    // Predicated region
    $region22: #{tpu_custom_call.1} parent=1 // pred_check
      %p96 = pneg %p95
    $region23: #{tpu_custom_call.1} parent=1 // pred_check_branch
      %98 = sbr.rel (%p96) target = $region25
    $region24: #{tpu_custom_call.1} parent=1 // pred_region
      %vm99 = vcmask 523264
      %100 = vst.msk [vmem:[#allocation2] sm:$0xff] %vm99, 0.0
      %101 = vst.msk [vmem:[#allocation2 + $0x8] sm:$0xff] %vm99, 0.0
      %102 = vst.msk [vmem:[#allocation2 + $0x10] sm:$0xff] %vm99, 0.0
      %103 = vst.msk [vmem:[#allocation2 + $0x18] sm:$0xff] %vm99, 0.0
      %104 = vst.msk [vmem:[#allocation2 + $0x20] sm:$0xff] %vm99, 0.0
      %105 = vst.msk [vmem:[#allocation2 + $0x28] sm:$0xff] %vm99, 0.0
      %106 = vst.msk [vmem:[#allocation2 + $0x30] sm:$0xff] %vm99, 0.0
      %107 = vst.msk [vmem:[#allocation2 + $0x38] sm:$0xff] %vm99, 0.0
      %108 = vst.msk [vmem:[#allocation2 + $0x40] sm:$0xff] %vm99, 0.0
      %109 = vst.msk [vmem:[#allocation2 + $0x48] sm:$0xff] %vm99, 0.0
      %110 = vst.msk [vmem:[#allocation2 + $0x50] sm:$0xff] %vm99, 0.0
      %111 = vst.msk [vmem:[#allocation2 + $0x58] sm:$0xff] %vm99, 0.0
      %112 = vst.msk [vmem:[#allocation2 + $0x60] sm:$0xff] %vm99, 0.0
      %113 = vst.msk [vmem:[#allocation2 + $0x68] sm:$0xff] %vm99, 0.0
      %114 = vst.msk [vmem:[#allocation2 + $0x70] sm:$0xff] %vm99, 0.0
      %115 = vst.msk [vmem:[#allocation2 + $0x78] sm:$0xff] %vm99, 0.0
    $region25: #{tpu_custom_call.1} parent=1 // pred_fallthru
      _
    %s116 = sld [smem:[#allocation5]]
    %p117 = scmp.lt.s32.totalorder 0, %s116
    // Predicated region
    $region26: #{tpu_custom_call.1} parent=1 // pred_check
      %p118 = pneg %p117
    $region27: #{tpu_custom_call.1} parent=1 // pred_check_branch
      %120 = sbr.rel (%p118) target = $region29
    $region28: #{tpu_custom_call.1} parent=1 // pred_region
      %v121 = vld [vmem:[#allocation2] sm:$0xff]
      %v122 = vld [vmem:[#allocation2 + $0x8] sm:$0xff]
      %v123 = vld [vmem:[#allocation2 + $0x10] sm:$0xff]
      %v124 = vld [vmem:[#allocation2 + $0x18] sm:$0xff]
      %v125 = vld [vmem:[#allocation2 + $0x20] sm:$0xff]
      %v126 = vld [vmem:[#allocation2 + $0x28] sm:$0xff]
      %v127 = vld [vmem:[#allocation2 + $0x30] sm:$0xff]
      %v128 = vld [vmem:[#allocation2 + $0x38] sm:$0xff]
      %v129 = vld [vmem:[#allocation2 + $0x40] sm:$0xff]
      %v130 = vld [vmem:[#allocation2 + $0x48] sm:$0xff]
      %v131 = vld [vmem:[#allocation2 + $0x50] sm:$0xff]
      %v132 = vld [vmem:[#allocation2 + $0x58] sm:$0xff]
      %v133 = vld [vmem:[#allocation2 + $0x60] sm:$0xff]
      %v134 = vld [vmem:[#allocation2 + $0x68] sm:$0xff]
      %v135 = vld [vmem:[#allocation2 + $0x70] sm:$0xff]
      %v136 = vld [vmem:[#allocation2 + $0x78] sm:$0xff]
      %v137 = vld [vmem:[%s75] sm:$0xf]
      %v138 = vld [vmem:[%s75 + $0x4] sm:$0xf]
      %v139 = vld [vmem:[%s75 + $0x8] sm:$0xf]
      %v140 = vld [vmem:[%s75 + $0xc] sm:$0xf]
      %v141 = vld [vmem:[%s75 + $0x10] sm:$0xf]
      %v142 = vld [vmem:[%s75 + $0x14] sm:$0xf]
      %v143 = vld [vmem:[%s75 + $0x18] sm:$0xf]
      %v144 = vld [vmem:[%s75 + $0x1c] sm:$0xf]
      %v145 = vld [vmem:[%s75 + $0x20] sm:$0xf]
      %v146 = vld [vmem:[%s75 + $0x24] sm:$0xf]
      %v147 = vld [vmem:[%s75 + $0x28] sm:$0xf]
      %v148 = vld [vmem:[%s75 + $0x2c] sm:$0xf]
      %v149 = vld [vmem:[%s75 + $0x30] sm:$0xf]
      %v150 = vld [vmem:[%s75 + $0x34] sm:$0xf]
      %v151 = vld [vmem:[%s75 + $0x38] sm:$0xf]
      %v152 = vld [vmem:[%s75 + $0x3c] sm:$0xf]
      %v153 = vld [vmem:[%s88] sm:$0xf]
      %v154 = vld [vmem:[%s88 + $0x4] sm:$0xf]
      %v155 = vld [vmem:[%s88 + $0x8] sm:$0xf]
      %v156 = vld [vmem:[%s88 + $0xc] sm:$0xf]
      %v157 = vld [vmem:[%s88 + $0x10] sm:$0xf]
      %v158 = vld [vmem:[%s88 + $0x14] sm:$0xf]
      %v159 = vld [vmem:[%s88 + $0x18] sm:$0xf]
      %v160 = vld [vmem:[%s88 + $0x1c] sm:$0xf]
      %v161 = vld [vmem:[%s88 + $0x20] sm:$0xf]
      %v162 = vld [vmem:[%s88 + $0x24] sm:$0xf]
      %v163 = vld [vmem:[%s88 + $0x28] sm:$0xf]
      %v164 = vld [vmem:[%s88 + $0x2c] sm:$0xf]
      %v165 = vld [vmem:[%s88 + $0x30] sm:$0xf]
      %v166 = vld [vmem:[%s88 + $0x34] sm:$0xf]
      %v167 = vld [vmem:[%s88 + $0x38] sm:$0xf]
      %v168 = vld [vmem:[%s88 + $0x3c] sm:$0xf]
      %v185 = vunpack.c.l.b16 %v137
      %v186 = vunpack.c.l.b16 %v138
      %v187 = vunpack.c.l.b16 %v139
      %v188 = vunpack.c.l.b16 %v140
      %v189 = vunpack.c.l.b16 %v141
      %v190 = vunpack.c.l.b16 %v142
      %v191 = vunpack.c.l.b16 %v143
      %v192 = vunpack.c.l.b16 %v144
      %v193 = vunpack.c.l.b16 %v145
      %v194 = vunpack.c.l.b16 %v146
      %v195 = vunpack.c.l.b16 %v147
      %v196 = vunpack.c.l.b16 %v148
      %v197 = vunpack.c.l.b16 %v149
      %v198 = vunpack.c.l.b16 %v150
      %v199 = vunpack.c.l.b16 %v151
      %v200 = vunpack.c.l.b16 %v152
      %v201 = vpack.c.b16 %v186, %v185
      %v202 = vpack.c.b16 %v188, %v187
      %v203 = vpack.c.b16 %v190, %v189
      %v204 = vpack.c.b16 %v192, %v191
      %v205 = vpack.c.b16 %v194, %v193
      %v206 = vpack.c.b16 %v196, %v195
      %v207 = vpack.c.b16 %v198, %v197
      %v208 = vpack.c.b16 %v200, %v199
      %v233 = vunpack.c.l.b16 %v153
      %v234 = vunpack.c.l.b16 %v154
      %v235 = vunpack.c.l.b16 %v155
      %v236 = vunpack.c.l.b16 %v156
      %v237 = vunpack.c.l.b16 %v157
      %v238 = vunpack.c.l.b16 %v158
      %v239 = vunpack.c.l.b16 %v159
      %v240 = vunpack.c.l.b16 %v160
      %v241 = vunpack.c.l.b16 %v161
      %v242 = vunpack.c.l.b16 %v162
      %v243 = vunpack.c.l.b16 %v163
      %v244 = vunpack.c.l.b16 %v164
      %v245 = vunpack.c.l.b16 %v165
      %v246 = vunpack.c.l.b16 %v166
      %v247 = vunpack.c.l.b16 %v167
      %v248 = vunpack.c.l.b16 %v168
      %v249 = vpack.c.b16 %v234, %v233
      %v250 = vpack.c.b16 %v236, %v235
      %v251 = vpack.c.b16 %v238, %v237
      %v252 = vpack.c.b16 %v240, %v239
      %v253 = vpack.c.b16 %v242, %v241
      %v254 = vpack.c.b16 %v244, %v243
      %v255 = vpack.c.b16 %v246, %v245
      %v256 = vpack.c.b16 %v248, %v247
      %265 = vmatprep.subr.bf16.mxu0 0
      %266 = vmatpush1.bf16.msra.mxu0 %v249
      %267 = vmatprep.subr.bf16.mxu0 0
      %268 = vmatpush1.bf16.msra.mxu0 %v250
      %269 = vmatprep.subr.bf16.mxu0 0
      %270 = vmatpush1.bf16.msra.mxu0 %v251
      %271 = vmatprep.subr.bf16.mxu0 0
      %272 = vmatpush1.bf16.msra.mxu0 %v252
      %273 = vmatprep.subr.bf16.mxu0 0
      %274 = vmatpush1.bf16.msra.mxu0 %v253
      %275 = vmatprep.subr.bf16.mxu0 0
      %276 = vmatpush1.bf16.msra.mxu0 %v254
      %277 = vmatprep.subr.bf16.mxu0 0
      %278 = vmatpush1.bf16.msra.mxu0 %v255
      %279 = vmatprep.subr.bf16.mxu0 0
      %280 = vmatpush1.bf16.msra.mxu0 %v256
      %281 = vmatprep.subr.bf16.mxu0 0
      %282 = vmatpush1.bf16.msra.mxu0 0
      %283 = vmatprep.subr.bf16.mxu0 0
      %284 = vmatpush1.bf16.msra.mxu0 0
      %285 = vmatprep.subr.bf16.mxu0 0
      %286 = vmatpush1.bf16.msra.mxu0 0
      %287 = vmatprep.subr.bf16.mxu0 0
      %288 = vmatpush1.bf16.msra.mxu0 0
      %289 = vmatprep.subr.bf16.mxu0 0
      %290 = vmatpush1.bf16.msra.mxu0 0
      %291 = vmatprep.subr.bf16.mxu0 0
      %292 = vmatpush1.bf16.msra.mxu0 0
      %293 = vmatprep.subr.bf16.mxu0 0
      %294 = vmatpush1.bf16.msra.mxu0 0
      %295 = vmatprep.subr.bf16.mxu0 0
      %296 = vmatpush1.bf16.msra.mxu0 0
      %297 = vmatprep.mubr.bf16.mxu0 0
      %298 = vmatmul.mubr.bf16.gmra.mrb[0].mxu0 %v201
      %v299 = vpop.f32.mrb[0].mxu0
      %v300 = vadd.f32 0.0, %v299
      %v301 = vpop.f32.mrb[0].mxu0
      %v302 = vpop.f32.mrb[0].mxu0
      %v303 = vadd.f32 0.0, %v302
      %v304 = vpop.f32.mrb[0].mxu0
      %305 = vmatprep.mubr.bf16.mxu0 0
      %306 = vmatmul.mubr.bf16.gmra.mrb[0].mxu0 %v202
      %v307 = vpop.f32.mrb[0].mxu0
      %v308 = vadd.f32 0.0, %v307
      %v309 = vpop.f32.mrb[0].mxu0
      %v310 = vpop.f32.mrb[0].mxu0
      %v311 = vadd.f32 0.0, %v310
      %v312 = vpop.f32.mrb[0].mxu0
      %313 = vmatprep.mubr.bf16.mxu0 0
      %314 = vmatmul.mubr.bf16.gmra.mrb[0].mxu0 %v203
      %v315 = vpop.f32.mrb[0].mxu0
      %v316 = vadd.f32 0.0, %v315
      %v317 = vpop.f32.mrb[0].mxu0
      %v318 = vpop.f32.mrb[0].mxu0
      %v319 = vadd.f32 0.0, %v318
      %v320 = vpop.f32.mrb[0].mxu0
      %321 = vmatprep.mubr.bf16.mxu0 0
      %322 = vmatmul.mubr.bf16.gmra.mrb[0].mxu0 %v204
      %v323 = vpop.f32.mrb[0].mxu0
      %v324 = vadd.f32 0.0, %v323
      %v325 = vpop.f32.mrb[0].mxu0
      %v326 = vpop.f32.mrb[0].mxu0
      %v327 = vadd.f32 0.0, %v326
      %v328 = vpop.f32.mrb[0].mxu0
      %329 = vmatprep.mubr.bf16.mxu0 0
      %330 = vmatmul.mubr.bf16.gmra.mrb[0].mxu0 %v205
      %v331 = vpop.f32.mrb[0].mxu0
      %v332 = vadd.f32 0.0, %v331
      %v333 = vpop.f32.mrb[0].mxu0
      %v334 = vpop.f32.mrb[0].mxu0
      %v335 = vadd.f32 0.0, %v334
      %v336 = vpop.f32.mrb[0].mxu0
      %337 = vmatprep.mubr.bf16.mxu0 0
      %338 = vmatmul.mubr.bf16.gmra.mrb[0].mxu0 %v206
      %v339 = vpop.f32.mrb[0].mxu0
      %v340 = vadd.f32 0.0, %v339
      %v341 = vpop.f32.mrb[0].mxu0
      %v342 = vpop.f32.mrb[0].mxu0
      %v343 = vadd.f32 0.0, %v342
      %v344 = vpop.f32.mrb[0].mxu0
      %345 = vmatprep.mubr.bf16.mxu0 0
      %346 = vmatmul.mubr.bf16.gmra.mrb[0].mxu0 %v207
      %v347 = vpop.f32.mrb[0].mxu0
      %v348 = vadd.f32 0.0, %v347
      %v349 = vpop.f32.mrb[0].mxu0
      %v350 = vpop.f32.mrb[0].mxu0
      %v351 = vadd.f32 0.0, %v350
      %v352 = vpop.f32.mrb[0].mxu0
      %353 = vmatprep.mubr.bf16.mxu0 0
      %354 = vmatmul.mubr.bf16.gmra.mrb[0].mxu0 %v208
      %v355 = vpop.f32.mrb[0].mxu0
      %v356 = vadd.f32 0.0, %v355
      %v357 = vpop.f32.mrb[0].mxu0
      %v358 = vpop.f32.mrb[0].mxu0
      %v359 = vadd.f32 0.0, %v358
      %v360 = vpop.f32.mrb[0].mxu0
      %361 = vdwg.mxu0
      %v362 = vadd.f32 %v121, %v300
      %v363 = vadd.f32 %v122, %v303
      %v364 = vadd.f32 %v123, %v308
      %v365 = vadd.f32 %v124, %v311
      %v366 = vadd.f32 %v125, %v316
      %v367 = vadd.f32 %v126, %v319
      %v368 = vadd.f32 %v127, %v324
      %v369 = vadd.f32 %v128, %v327
      %v370 = vadd.f32 %v129, %v332
      %v371 = vadd.f32 %v130, %v335
      %v372 = vadd.f32 %v131, %v340
      %v373 = vadd.f32 %v132, %v343
      %v374 = vadd.f32 %v133, %v348
      %v375 = vadd.f32 %v134, %v351
      %v376 = vadd.f32 %v135, %v356
      %v377 = vadd.f32 %v136, %v359
      %vm378 = vcmask 523264
      %379 = vst.msk [vmem:[#allocation2] sm:$0xff] %vm378, %v362
      %380 = vst.msk [vmem:[#allocation2 + $0x8] sm:$0xff] %vm378, %v363
      %381 = vst.msk [vmem:[#allocation2 + $0x10] sm:$0xff] %vm378, %v364
      %382 = vst.msk [vmem:[#allocation2 + $0x18] sm:$0xff] %vm378, %v365
      %383 = vst.msk [vmem:[#allocation2 + $0x20] sm:$0xff] %vm378, %v366
      %384 = vst.msk [vmem:[#allocation2 + $0x28] sm:$0xff] %vm378, %v367
      %385 = vst.msk [vmem:[#allocation2 + $0x30] sm:$0xff] %vm378, %v368
      %386 = vst.msk [vmem:[#allocation2 + $0x38] sm:$0xff] %vm378, %v369
      %387 = vst.msk [vmem:[#allocation2 + $0x40] sm:$0xff] %vm378, %v370
      %388 = vst.msk [vmem:[#allocation2 + $0x48] sm:$0xff] %vm378, %v371
      %389 = vst.msk [vmem:[#allocation2 + $0x50] sm:$0xff] %vm378, %v372
      %390 = vst.msk [vmem:[#allocation2 + $0x58] sm:$0xff] %vm378, %v373
      %391 = vst.msk [vmem:[#allocation2 + $0x60] sm:$0xff] %vm378, %v374
      %392 = vst.msk [vmem:[#allocation2 + $0x68] sm:$0xff] %vm378, %v375
      %393 = vst.msk [vmem:[#allocation2 + $0x70] sm:$0xff] %vm378, %v376
      %394 = vst.msk [vmem:[#allocation2 + $0x78] sm:$0xff] %vm378, %v377
    $region29: #{tpu_custom_call.1} parent=1 // pred_fallthru
      _
    // Predicated region
    $region30: #{tpu_custom_call.1} parent=1 // pred_check
      %p395 = pneg %p95
    $region31: #{tpu_custom_call.1} parent=1 // pred_check_branch
      %397 = sbr.rel (%p395) target = $region33
    $region32: #{tpu_custom_call.1} parent=1 // pred_region
      %v398 = vld [vmem:[#allocation2] sm:$0xff]
      %v399 = vld [vmem:[#allocation2 + $0x8] sm:$0xff]
      %v400 = vld [vmem:[#allocation2 + $0x10] sm:$0xff]
      %v401 = vld [vmem:[#allocation2 + $0x18] sm:$0xff]
      %v402 = vld [vmem:[#allocation2 + $0x20] sm:$0xff]
      %v403 = vld [vmem:[#allocation2 + $0x28] sm:$0xff]
      %v404 = vld [vmem:[#allocation2 + $0x30] sm:$0xff]
      %v405 = vld [vmem:[#allocation2 + $0x38] sm:$0xff]
      %v406 = vld [vmem:[#allocation2 + $0x40] sm:$0xff]
      %v407 = vld [vmem:[#allocation2 + $0x48] sm:$0xff]
      %v408 = vld [vmem:[#allocation2 + $0x50] sm:$0xff]
      %v409 = vld [vmem:[#allocation2 + $0x58] sm:$0xff]
      %v410 = vld [vmem:[#allocation2 + $0x60] sm:$0xff]
      %v411 = vld [vmem:[#allocation2 + $0x68] sm:$0xff]
      %v412 = vld [vmem:[#allocation2 + $0x70] sm:$0xff]
      %v413 = vld [vmem:[#allocation2 + $0x78] sm:$0xff]
      %v414 = vld [vmem:[%s4] sm:$0xff]
      %v415 = vld [vmem:[%s4 + $0x8] sm:$0xff]
      %v416 = vld [vmem:[%s4 + $0x10] sm:$0xff]
      %v417 = vld [vmem:[%s4 + $0x18] sm:$0xff]
      %v418 = vld [vmem:[%s4 + $0x20] sm:$0xff]
      %v419 = vld [vmem:[%s4 + $0x28] sm:$0xff]
      %v420 = vld [vmem:[%s4 + $0x30] sm:$0xff]
      %v421 = vld [vmem:[%s4 + $0x38] sm:$0xff]
      %v422 = vld [vmem:[%s4 + $0x40] sm:$0xff]
      %v423 = vld [vmem:[%s4 + $0x48] sm:$0xff]
      %v424 = vld [vmem:[%s4 + $0x50] sm:$0xff]
      %v425 = vld [vmem:[%s4 + $0x58] sm:$0xff]
      %v426 = vld [vmem:[%s4 + $0x60] sm:$0xff]
      %v427 = vld [vmem:[%s4 + $0x68] sm:$0xff]
      %v428 = vld [vmem:[%s4 + $0x70] sm:$0xff]
      %v429 = vld [vmem:[%s4 + $0x78] sm:$0xff]
      %v430 = vadd.f32 %v414, %v398
      %v431 = vadd.f32 %v415, %v399
      %v432 = vadd.f32 %v416, %v400
      %v433 = vadd.f32 %v417, %v401
      %v434 = vadd.f32 %v418, %v402
      %v435 = vadd.f32 %v419, %v403
      %v436 = vadd.f32 %v420, %v404
      %v437 = vadd.f32 %v421, %v405
      %v438 = vadd.f32 %v422, %v406
      %v439 = vadd.f32 %v423, %v407
      %v440 = vadd.f32 %v424, %v408
      %v441 = vadd.f32 %v425, %v409
      %v442 = vadd.f32 %v426, %v410
      %v443 = vadd.f32 %v427, %v411
      %v444 = vadd.f32 %v428, %v412
      %v445 = vadd.f32 %v429, %v413
      %v446 = vpack.c.bf16 %v431, %v430
      %v447 = vpack.c.bf16 %v433, %v432
      %v448 = vpack.c.bf16 %v435, %v434
      %v449 = vpack.c.bf16 %v437, %v436
      %v450 = vpack.c.bf16 %v439, %v438
      %v451 = vpack.c.bf16 %v441, %v440
      %v452 = vpack.c.bf16 %v443, %v442
      %v453 = vpack.c.bf16 %v445, %v444
      %v454 = vmul.f32 %v414, %v398
      %v455 = vmul.f32 %v415, %v399
      %v456 = vmul.f32 %v416, %v400
      %v457 = vmul.f32 %v417, %v401
      %v458 = vmul.f32 %v418, %v402
      %v459 = vmul.f32 %v419, %v403
      %v460 = vmul.f32 %v420, %v404
      %v461 = vmul.f32 %v421, %v405
      %v462 = vmul.f32 %v422, %v406
      %v463 = vmul.f32 %v423, %v407
      %v464 = vmul.f32 %v424, %v408
      %v465 = vmul.f32 %v425, %v409
      %v466 = vmul.f32 %v426, %v410
      %v467 = vmul.f32 %v427, %v411
      %v468 = vmul.f32 %v428, %v412
      %v469 = vmul.f32 %v429, %v413
      %v470 = vpack.c.bf16 %v455, %v454
      %v471 = vpack.c.bf16 %v457, %v456
      %v472 = vpack.c.bf16 %v459, %v458
      %v473 = vpack.c.bf16 %v461, %v460
      %v474 = vpack.c.bf16 %v463, %v462
      %v475 = vpack.c.bf16 %v465, %v464
      %v476 = vpack.c.bf16 %v467, %v466
      %v477 = vpack.c.bf16 %v469, %v468
      %486 = vrot.lane.b32.xlu0 %v470, 64
      %v487 = vpop.permute.xlu0 %486
      %488 = vrot.lane.b32.xlu0 %v471, 64
      %v489 = vpop.permute.xlu0 %488
      %490 = vrot.lane.b32.xlu0 %v472, 64
      %v491 = vpop.permute.xlu0 %490
      %492 = vrot.lane.b32.xlu0 %v473, 64
      %v493 = vpop.permute.xlu0 %492
      %494 = vrot.lane.b32.xlu0 %v474, 64
      %v495 = vpop.permute.xlu0 %494
      %496 = vrot.lane.b32.xlu0 %v475, 64
      %v497 = vpop.permute.xlu0 %496
      %498 = vrot.lane.b32.xlu0 %v476, 64
      %v499 = vpop.permute.xlu0 %498
      %500 = vrot.lane.b32.xlu0 %v477, 64
      %v501 = vpop.permute.xlu0 %500
      %vm502 = vcmask 523264
      %v505 = vsel %vm502, %v446, %v487
      %v509 = vsel %vm502, %v447, %v489
      %v513 = vsel %vm502, %v448, %v491
      %v517 = vsel %vm502, %v449, %v493
      %v521 = vsel %vm502, %v450, %v495
      %v525 = vsel %vm502, %v451, %v497
      %v529 = vsel %vm502, %v452, %v499
      %v533 = vsel %vm502, %v453, %v501
      %v535 = vld [vmem:[%s5] sm:$0xff]
      %v536 = vld [vmem:[%s5 + $0x8] sm:$0xff]
      %v537 = vld [vmem:[%s5 + $0x10] sm:$0xff]
      %v538 = vld [vmem:[%s5 + $0x18] sm:$0xff]
      %v539 = vld [vmem:[%s5 + $0x20] sm:$0xff]
      %v540 = vld [vmem:[%s5 + $0x28] sm:$0xff]
      %v541 = vld [vmem:[%s5 + $0x30] sm:$0xff]
      %v542 = vld [vmem:[%s5 + $0x38] sm:$0xff]
      %v543 = vld [vmem:[%s5 + $0x40] sm:$0xff]
      %v544 = vld [vmem:[%s5 + $0x48] sm:$0xff]
      %v545 = vld [vmem:[%s5 + $0x50] sm:$0xff]
      %v546 = vld [vmem:[%s5 + $0x58] sm:$0xff]
      %v547 = vld [vmem:[%s5 + $0x60] sm:$0xff]
      %v548 = vld [vmem:[%s5 + $0x68] sm:$0xff]
      %v549 = vld [vmem:[%s5 + $0x70] sm:$0xff]
      %v550 = vld [vmem:[%s5 + $0x78] sm:$0xff]
      %v551 = vld [vmem:[%s6] sm:$0x3]
      %v553 = vlaneseq
      %v554 = vshrl.u32 %v553, 7
      %v555 = vsub.s32 0, %v554
      %v556 = vrot.slane %v551, %v555
      %v557 = vlaneseq
      %v558 = vshrl.u32 %v557, 7
      %v559 = vsub.s32 1, %v558
      %v560 = vrot.slane %v551, %v559
      %v579 = vunpack.c.l.b16 %v535
      %v580 = vunpack.c.h.b16 %v535
      %v581 = vunpack.c.l.b16 %v536
      %v582 = vunpack.c.h.b16 %v536
      %v583 = vunpack.c.l.b16 %v537
      %v584 = vunpack.c.h.b16 %v537
      %v585 = vunpack.c.l.b16 %v538
      %v586 = vunpack.c.h.b16 %v538
      %v587 = vunpack.c.l.b16 %v539
      %v588 = vunpack.c.h.b16 %v539
      %v589 = vunpack.c.l.b16 %v540
      %v590 = vunpack.c.h.b16 %v540
      %v591 = vunpack.c.l.b16 %v541
      %v592 = vunpack.c.h.b16 %v541
      %v593 = vunpack.c.l.b16 %v542
      %v594 = vunpack.c.h.b16 %v542
      %v595 = vunpack.c.l.b16 %v543
      %v596 = vunpack.c.h.b16 %v543
      %v597 = vunpack.c.l.b16 %v544
      %v598 = vunpack.c.h.b16 %v544
      %v599 = vunpack.c.l.b16 %v545
      %v600 = vunpack.c.h.b16 %v545
      %v601 = vunpack.c.l.b16 %v546
      %v602 = vunpack.c.h.b16 %v546
      %v603 = vunpack.c.l.b16 %v547
      %v604 = vunpack.c.h.b16 %v547
      %v605 = vunpack.c.l.b16 %v548
      %v606 = vunpack.c.h.b16 %v548
      %v607 = vunpack.c.l.b16 %v549
      %v608 = vunpack.c.h.b16 %v549
      %v609 = vunpack.c.l.b16 %v550
      %v610 = vunpack.c.h.b16 %v550
      %v611 = vpack.c.b16 %v581, %v579
      %v612 = vpack.c.b16 %v582, %v580
      %v613 = vpack.c.b16 %v585, %v583
      %v614 = vpack.c.b16 %v586, %v584
      %v615 = vpack.c.b16 %v589, %v587
      %v616 = vpack.c.b16 %v590, %v588
      %v617 = vpack.c.b16 %v593, %v591
      %v618 = vpack.c.b16 %v594, %v592
      %v619 = vpack.c.b16 %v597, %v595
      %v620 = vpack.c.b16 %v598, %v596
      %v621 = vpack.c.b16 %v601, %v599
      %v622 = vpack.c.b16 %v602, %v600
      %v623 = vpack.c.b16 %v605, %v603
      %v624 = vpack.c.b16 %v606, %v604
      %v625 = vpack.c.b16 %v609, %v607
      %v626 = vpack.c.b16 %v610, %v608
      %643 = vmatprep.subr.bf16.mxu0 %v612
      %644 = vmatpush1.bf16.msra.mxu0 %v611
      %645 = vmatprep.subr.bf16.mxu0 %v614
      %646 = vmatpush1.bf16.msra.mxu0 %v613
      %647 = vmatprep.subr.bf16.mxu0 %v616
      %648 = vmatpush1.bf16.msra.mxu0 %v615
      %649 = vmatprep.subr.bf16.mxu0 %v618
      %650 = vmatpush1.bf16.msra.mxu0 %v617
      %651 = vmatprep.subr.bf16.mxu0 %v620
      %652 = vmatpush1.bf16.msra.mxu0 %v619
      %653 = vmatprep.subr.bf16.mxu0 %v622
      %654 = vmatpush1.bf16.msra.mxu0 %v621
      %655 = vmatprep.subr.bf16.mxu0 %v624
      %656 = vmatpush1.bf16.msra.mxu0 %v623
      %657 = vmatprep.subr.bf16.mxu0 %v626
      %658 = vmatpush1.bf16.msra.mxu0 %v625
      %659 = vmatprep.subr.bf16.mxu0 0
      %660 = vmatpush1.bf16.msra.mxu0 0
      %661 = vmatprep.subr.bf16.mxu0 0
      %662 = vmatpush1.bf16.msra.mxu0 0
      %663 = vmatprep.subr.bf16.mxu0 0
      %664 = vmatpush1.bf16.msra.mxu0 0
      %665 = vmatprep.subr.bf16.mxu0 0
      %666 = vmatpush1.bf16.msra.mxu0 0
      %667 = vmatprep.subr.bf16.mxu0 0
      %668 = vmatpush1.bf16.msra.mxu0 0
      %669 = vmatprep.subr.bf16.mxu0 0
      %670 = vmatpush1.bf16.msra.mxu0 0
      %671 = vmatprep.subr.bf16.mxu0 0
      %672 = vmatpush1.bf16.msra.mxu0 0
      %673 = vmatprep.subr.bf16.mxu0 0
      %674 = vmatpush1.bf16.msra.mxu0 0
      %675 = vmatprep.mubr.bf16.mxu0 0
      %676 = vmatmul.mubr.bf16.gmra.mrb[0].mxu0 %v505
      %v677 = vpop.f32.mrb[0].mxu0
      %v678 = vadd.f32 %v556, %v677
      %v679 = vpop.f32.mrb[0].mxu0
      %v680 = vadd.f32 %v560, %v679
      %v681 = vpop.f32.mrb[0].mxu0
      %v682 = vadd.f32 %v556, %v681
      %v683 = vpop.f32.mrb[0].mxu0
      %v684 = vadd.f32 %v560, %v683
      %685 = vmatprep.mubr.bf16.mxu0 0
      %686 = vmatmul.mubr.bf16.gmra.mrb[0].mxu0 %v509
      %v687 = vpop.f32.mrb[0].mxu0
      %v688 = vadd.f32 %v556, %v687
      %v689 = vpop.f32.mrb[0].mxu0
      %v690 = vadd.f32 %v560, %v689
      %v691 = vpop.f32.mrb[0].mxu0
      %v692 = vadd.f32 %v556, %v691
      %v693 = vpop.f32.mrb[0].mxu0
      %v694 = vadd.f32 %v560, %v693
      %695 = vmatprep.mubr.bf16.mxu0 0
      %696 = vmatmul.mubr.bf16.gmra.mrb[0].mxu0 %v513
      %v697 = vpop.f32.mrb[0].mxu0
      %v698 = vadd.f32 %v556, %v697
      %v699 = vpop.f32.mrb[0].mxu0
      %v700 = vadd.f32 %v560, %v699
      %v701 = vpop.f32.mrb[0].mxu0
      %v702 = vadd.f32 %v556, %v701
      %v703 = vpop.f32.mrb[0].mxu0
      %v704 = vadd.f32 %v560, %v703
      %705 = vmatprep.mubr.bf16.mxu0 0
      %706 = vmatmul.mubr.bf16.gmra.mrb[0].mxu0 %v517
      %v707 = vpop.f32.mrb[0].mxu0
      %v708 = vadd.f32 %v556, %v707
      %v709 = vpop.f32.mrb[0].mxu0
      %v710 = vadd.f32 %v560, %v709
      %v711 = vpop.f32.mrb[0].mxu0
      %v712 = vadd.f32 %v556, %v711
      %v713 = vpop.f32.mrb[0].mxu0
      %v714 = vadd.f32 %v560, %v713
      %715 = vmatprep.mubr.bf16.mxu0 0
      %716 = vmatmul.mubr.bf16.gmra.mrb[0].mxu0 %v521
      %v717 = vpop.f32.mrb[0].mxu0
      %v718 = vadd.f32 %v556, %v717
      %v719 = vpop.f32.mrb[0].mxu0
      %v720 = vadd.f32 %v560, %v719
      %v721 = vpop.f32.mrb[0].mxu0
      %v722 = vadd.f32 %v556, %v721
      %v723 = vpop.f32.mrb[0].mxu0
      %v724 = vadd.f32 %v560, %v723
      %725 = vmatprep.mubr.bf16.mxu0 0
      %726 = vmatmul.mubr.bf16.gmra.mrb[0].mxu0 %v525
      %v727 = vpop.f32.mrb[0].mxu0
      %v728 = vadd.f32 %v556, %v727
      %v729 = vpop.f32.mrb[0].mxu0
      %v730 = vadd.f32 %v560, %v729
      %v731 = vpop.f32.mrb[0].mxu0
      %v732 = vadd.f32 %v556, %v731
      %v733 = vpop.f32.mrb[0].mxu0
      %v734 = vadd.f32 %v560, %v733
      %735 = vmatprep.mubr.bf16.mxu0 0
      %736 = vmatmul.mubr.bf16.gmra.mrb[0].mxu0 %v529
      %v737 = vpop.f32.mrb[0].mxu0
      %v738 = vadd.f32 %v556, %v737
      %v739 = vpop.f32.mrb[0].mxu0
      %v740 = vadd.f32 %v560, %v739
      %v741 = vpop.f32.mrb[0].mxu0
      %v742 = vadd.f32 %v556, %v741
      %v743 = vpop.f32.mrb[0].mxu0
      %v744 = vadd.f32 %v560, %v743
      %745 = vmatprep.mubr.bf16.mxu0 0
      %746 = vmatmul.mubr.bf16.gmra.mrb[0].mxu0 %v533
      %v747 = vpop.f32.mrb[0].mxu0
      %v748 = vadd.f32 %v556, %v747
      %v749 = vpop.f32.mrb[0].mxu0
      %v750 = vadd.f32 %v560, %v749
      %v751 = vpop.f32.mrb[0].mxu0
      %v752 = vadd.f32 %v556, %v751
      %v753 = vpop.f32.mrb[0].mxu0
      %v754 = vadd.f32 %v560, %v753
      %755 = vdwg.mxu0
      %vm756 = vcmp.gt.f32.partialorder %v678, 0.0
      %vm757 = vcmp.gt.f32.partialorder %v680, 0.0
      %vm758 = vcmp.gt.f32.partialorder %v682, 0.0
      %vm759 = vcmp.gt.f32.partialorder %v684, 0.0
      %vm760 = vcmp.gt.f32.partialorder %v688, 0.0
      %vm761 = vcmp.gt.f32.partialorder %v690, 0.0
      %vm762 = vcmp.gt.f32.partialorder %v692, 0.0
      %vm763 = vcmp.gt.f32.partialorder %v694, 0.0
      %vm764 = vcmp.gt.f32.partialorder %v698, 0.0
      %vm765 = vcmp.gt.f32.partialorder %v700, 0.0
      %vm766 = vcmp.gt.f32.partialorder %v702, 0.0
      %vm767 = vcmp.gt.f32.partialorder %v704, 0.0
      %vm768 = vcmp.gt.f32.partialorder %v708, 0.0
      %vm769 = vcmp.gt.f32.partialorder %v710, 0.0
      %vm770 = vcmp.gt.f32.partialorder %v712, 0.0
      %vm771 = vcmp.gt.f32.partialorder %v714, 0.0
      %vm772 = vcmp.gt.f32.partialorder %v718, 0.0
      %vm773 = vcmp.gt.f32.partialorder %v720, 0.0
      %vm774 = vcmp.gt.f32.partialorder %v722, 0.0
      %vm775 = vcmp.gt.f32.partialorder %v724, 0.0
      %vm776 = vcmp.gt.f32.partialorder %v728, 0.0
      %vm777 = vcmp.gt.f32.partialorder %v730, 0.0
      %vm778 = vcmp.gt.f32.partialorder %v732, 0.0
      %vm779 = vcmp.gt.f32.partialorder %v734, 0.0
      %vm780 = vcmp.gt.f32.partialorder %v738, 0.0
      %vm781 = vcmp.gt.f32.partialorder %v740, 0.0
      %vm782 = vcmp.gt.f32.partialorder %v742, 0.0
      %vm783 = vcmp.gt.f32.partialorder %v744, 0.0
      %vm784 = vcmp.gt.f32.partialorder %v748, 0.0
      %vm785 = vcmp.gt.f32.partialorder %v750, 0.0
      %vm786 = vcmp.gt.f32.partialorder %v752, 0.0
      %vm787 = vcmp.gt.f32.partialorder %v754, 0.0
      %v788 = vmul.f32 %v678, 0.01
      %v789 = vmul.f32 %v680, 0.01
      %v790 = vmul.f32 %v682, 0.01
      %v791 = vmul.f32 %v684, 0.01
      %v792 = vmul.f32 %v688, 0.01
      %v793 = vmul.f32 %v690, 0.01
      %v794 = vmul.f32 %v692, 0.01
      %v795 = vmul.f32 %v694, 0.01
      %v796 = vmul.f32 %v698, 0.01
      %v797 = vmul.f32 %v700, 0.01
      %v798 = vmul.f32 %v702, 0.01
      %v799 = vmul.f32 %v704, 0.01
      %v800 = vmul.f32 %v708, 0.01
      %v801 = vmul.f32 %v710, 0.01
      %v802 = vmul.f32 %v712, 0.01
      %v803 = vmul.f32 %v714, 0.01
      %v804 = vmul.f32 %v718, 0.01
      %v805 = vmul.f32 %v720, 0.01
      %v806 = vmul.f32 %v722, 0.01
      %v807 = vmul.f32 %v724, 0.01
      %v808 = vmul.f32 %v728, 0.01
      %v809 = vmul.f32 %v730, 0.01
      %v810 = vmul.f32 %v732, 0.01
      %v811 = vmul.f32 %v734, 0.01
      %v812 = vmul.f32 %v738, 0.01
      %v813 = vmul.f32 %v740, 0.01
      %v814 = vmul.f32 %v742, 0.01
      %v815 = vmul.f32 %v744, 0.01
      %v816 = vmul.f32 %v748, 0.01
      %v817 = vmul.f32 %v750, 0.01
      %v818 = vmul.f32 %v752, 0.01
      %v819 = vmul.f32 %v754, 0.01
      %v820 = vsel %vm756, %v678, %v788
      %v821 = vsel %vm757, %v680, %v789
      %v822 = vsel %vm758, %v682, %v790
      %v823 = vsel %vm759, %v684, %v791
      %v824 = vsel %vm760, %v688, %v792
      %v825 = vsel %vm761, %v690, %v793
      %v826 = vsel %vm762, %v692, %v794
      %v827 = vsel %vm763, %v694, %v795
      %v828 = vsel %vm764, %v698, %v796
      %v829 = vsel %vm765, %v700, %v797
      %v830 = vsel %vm766, %v702, %v798
      %v831 = vsel %vm767, %v704, %v799
      %v832 = vsel %vm768, %v708, %v800
      %v833 = vsel %vm769, %v710, %v801
      %v834 = vsel %vm770, %v712, %v802
      %v835 = vsel %vm771, %v714, %v803
      %v836 = vsel %vm772, %v718, %v804
      %v837 = vsel %vm773, %v720, %v805
      %v838 = vsel %vm774, %v722, %v806
      %v839 = vsel %vm775, %v724, %v807
      %v840 = vsel %vm776, %v728, %v808
      %v841 = vsel %vm777, %v730, %v809
      %v842 = vsel %vm778, %v732, %v810
      %v843 = vsel %vm779, %v734, %v811
      %v844 = vsel %vm780, %v738, %v812
      %v845 = vsel %vm781, %v740, %v813
      %v846 = vsel %vm782, %v742, %v814
      %v847 = vsel %vm783, %v744, %v815
      %v848 = vsel %vm784, %v748, %v816
      %v849 = vsel %vm785, %v750, %v817
      %v850 = vsel %vm786, %v752, %v818
      %v851 = vsel %vm787, %v754, %v819
      %v852 = vadd.f32 %v820, %v821
      %v853 = vadd.f32 %v822, %v823
      %v854 = vadd.f32 %v824, %v825
      %v855 = vadd.f32 %v826, %v827
      %v856 = vadd.f32 %v828, %v829
      %v857 = vadd.f32 %v830, %v831
      %v858 = vadd.f32 %v832, %v833
      %v859 = vadd.f32 %v834, %v835
      %v860 = vadd.f32 %v836, %v837
      %v861 = vadd.f32 %v838, %v839
      %v862 = vadd.f32 %v840, %v841
      %v863 = vadd.f32 %v842, %v843
      %v864 = vadd.f32 %v844, %v845
      %v865 = vadd.f32 %v846, %v847
      %v866 = vadd.f32 %v848, %v849
      %v867 = vadd.f32 %v850, %v851
      %868 = vst [vmem:[#allocation6] sm:$0xff] %v852
      %869 = vst [vmem:[#allocation6 + $0x8] sm:$0xff] %v853
      %870 = vst [vmem:[#allocation6 + $0x10] sm:$0xff] %v854
      %871 = vst [vmem:[#allocation6 + $0x18] sm:$0xff] %v855
      %872 = vst [vmem:[#allocation6 + $0x20] sm:$0xff] %v856
      %873 = vst [vmem:[#allocation6 + $0x28] sm:$0xff] %v857
      %874 = vst [vmem:[#allocation6 + $0x30] sm:$0xff] %v858
      %875 = vst [vmem:[#allocation6 + $0x38] sm:$0xff] %v859
      %876 = vst [vmem:[#allocation6 + $0x40] sm:$0xff] %v860
      %877 = vst [vmem:[#allocation6 + $0x48] sm:$0xff] %v861
      %878 = vst [vmem:[#allocation6 + $0x50] sm:$0xff] %v862
      %879 = vst [vmem:[#allocation6 + $0x58] sm:$0xff] %v863
      %880 = vst [vmem:[#allocation6 + $0x60] sm:$0xff] %v864
      %881 = vst [vmem:[#allocation6 + $0x68] sm:$0xff] %v865
      %882 = vst [vmem:[#allocation6 + $0x70] sm:$0xff] %v866
      %883 = vst [vmem:[#allocation6 + $0x78] sm:$0xff] %v867
    $region33: #{tpu_custom_call.1} parent=1 // pred_fallthru
      _
    // Predicated region
    $region34: #{tpu_custom_call.1} parent=1 // pred_check
      _
    $region35: #{tpu_custom_call.1} parent=1 // pred_check_branch
      %885 = sbr.rel (0) target = $region37
    $region36: #{tpu_custom_call.1} parent=1 // pred_region
      %s887 = ssub.s32 2048, 2048
      %888 = vsyncadd [#allocation7], %s887
      %s889 = sshll.u32 [#allocation6], 4
      %s890 = int_to_ptr.vmem [resolvable:$true] %s889
      %895 = dma.vmem_to_hbm [thread:$0]  %s890, 2048, %s7, [#allocation7], 128, 128, 8
    $region37: #{tpu_custom_call.1} parent=1 // pred_fallthru
      _
    // Predicated region
    $region38: #{tpu_custom_call.1} parent=1 // pred_check
      _
    $region39: #{tpu_custom_call.1} parent=1 // pred_check_branch
      %897 = sbr.rel (0) target = $region41
    $region40: #{tpu_custom_call.1} parent=1 // pred_region
      %898 = dma.done [#allocation7], 2048
    $region41: #{tpu_custom_call.1} parent=1 // pred_fallthru
      _
    %899 = vsyncpa [#allocation7], 1

</llo_original>
